<compile_context>
chip_gen: v5e
topology: v5e:2x2
jax: 0.10.0
libtpu: 0.0.40
codegen_flags: <defaults>
</compile_context>

<pallas_src>
import functools

import jax
import jax.numpy as jnp
from jax.experimental import pallas as pl
from jax.experimental.pallas import tpu as pltpu


def _round_up(x, m):
    return ((x + m - 1) // m) * m


def _vmem_capacity_bytes():
    """Per-core VMEM capacity with a conservative fallback (v7x: 64 MiB)."""
    try:
        return int(pltpu.get_tpu_info().vmem_capacity_bytes)
    except Exception:  # pragma: no cover - older jax / query unavailable
        return 64 * 1024 * 1024


# --------------------------------------------------------------------------
# Kernels
# --------------------------------------------------------------------------
def _proj_kernel_single(x_ref, w_ref, b_ref, o_ref):
    """Single-K-step fast path: whole contraction in one MXU pass, no
    accumulator scratch / pl.when on the hot path."""
    o_ref[...] = (jnp.dot(x_ref[...], w_ref[...],
                          preferred_element_type=jnp.float32)
                  + b_ref[...]).astype(o_ref.dtype)


def _proj_kernel_multi(x_ref, w_ref, b_ref, o_ref, acc_ref):
    """Tiled-K path: K is the trailing 'arbitrary' axis, f32 VMEM acc."""
    kstep = pl.program_id(2)

    @pl.when(kstep == 0)
    def _():
        acc_ref[...] = jnp.zeros_like(acc_ref)

    acc_ref[...] += jnp.dot(x_ref[...], w_ref[...],
                            preferred_element_type=jnp.float32)

    @pl.when(kstep == pl.num_programs(2) - 1)
    def _():
        o_ref[...] = (acc_ref[...] + b_ref[...]).astype(o_ref.dtype)


# --------------------------------------------------------------------------
# pallas_call wrapper
# --------------------------------------------------------------------------
def _projection_matmul(patches, w2d, b2d, out_dtype, *, tm, tk, te):
    """patches: (M_pad, K_pad), w2d: (K_pad, E_pad), b2d: (1, E_pad) f32.
    Returns (M_pad, E_pad) in out_dtype."""
    m_pad, k_pad = patches.shape
    _, e_pad = w2d.shape
    assert m_pad % tm == 0 and k_pad % tk == 0
    assert e_pad % te == 0 and te % 128 == 0

    m_steps = m_pad // tm
    e_steps = e_pad // te
    k_steps = k_pad // tk
    single_k = (k_steps == 1)

    in_bytes = jnp.dtype(patches.dtype).itemsize
    out_bytes = jnp.dtype(out_dtype).itemsize
    # double-buffered tiles (+ resident f32 accumulator on the tiled-K path).
    est = (2 * tm * tk * in_bytes + 2 * tk * te * in_bytes
           + 2 * te * 4 + 2 * tm * te * out_bytes
           + (0 if single_k else tm * te * 4))
    vmem_limit = int(min(max(2 * est, 32 * 1024 * 1024),
                         int(0.75 * _vmem_capacity_bytes())))

    if single_k:
        return pl.pallas_call(
            _proj_kernel_single,
            out_shape=jax.ShapeDtypeStruct((m_pad, e_pad), out_dtype),
            grid_spec=pltpu.PrefetchScalarGridSpec(
                num_scalar_prefetch=0,
                grid=(m_steps, e_steps),
                in_specs=[
                    pl.BlockSpec((tm, k_pad), lambda i, j: (i, 0)),
                    pl.BlockSpec((k_pad, te), lambda i, j: (0, j)),
                    pl.BlockSpec((1, te), lambda i, j: (0, j)),
                ],
                out_specs=pl.BlockSpec((tm, te), lambda i, j: (i, j)),
            ),
            compiler_params=pltpu.CompilerParams(
                dimension_semantics=("parallel", "parallel"),
                vmem_limit_bytes=vmem_limit),
        )(patches, w2d, b2d)

    return pl.pallas_call(
        _proj_kernel_multi,
        out_shape=jax.ShapeDtypeStruct((m_pad, e_pad), out_dtype),
        grid_spec=pltpu.PrefetchScalarGridSpec(
            num_scalar_prefetch=0,
            grid=(m_steps, e_steps, k_steps),
            in_specs=[
                pl.BlockSpec((tm, tk), lambda i, j, k: (i, k)),
                pl.BlockSpec((tk, te), lambda i, j, k: (k, j)),
                pl.BlockSpec((1, te), lambda i, j, k: (0, j)),
            ],
            out_specs=pl.BlockSpec((tm, te), lambda i, j, k: (i, j)),
            scratch_shapes=[pltpu.VMEM((tm, te), jnp.float32)],
        ),
        compiler_params=pltpu.CompilerParams(
            dimension_semantics=("parallel", "parallel", "arbitrary"),
            vmem_limit_bytes=vmem_limit),
    )(patches, w2d, b2d)


# --------------------------------------------------------------------------
# Tiling choices
# --------------------------------------------------------------------------
def _choose_te(e_pad):
    """Largest divisor of E_pad that is a 128 multiple and <= 1024, so big
    embed dims are E-tiled (bounded VMEM on v7x + extra parallel work)."""
    if e_pad <= 1024:
        return e_pad
    for cand in (1024, 896, 768, 640, 512, 384, 256, 128):
        if e_pad % cand == 0:
            return cand
    return 128


def _choose_tm(m, e_steps):
    """Big MXU-friendly row tiles for large M; guarantee >= 2 steps on the
    parallel grid axes so both v7x TensorCores get work."""
    if m >= 8 * 512:
        tm = 512
    elif m >= 4 * 256:
        tm = 256
    elif m >= 2 * 128:
        tm = 128
    else:
        tm = max(8, _round_up(m, 8))
    m_steps = (m + tm - 1) // tm
    if e_steps * m_steps < 2 and m > 8:
        tm = max(8, _round_up((m + 1) // 2, 8))
    return tm


# --------------------------------------------------------------------------
# Forward
# --------------------------------------------------------------------------
def patch_embed_forward(x, weight, bias, *, patch_size, kernel_size=None,
                        compute_dtype=jnp.bfloat16, max_k_block=2048,
                        channels_last=False):
    """Forward of PatchEmbed.

    x:      (B, C, H, W)   NCHW, as in the PyTorch module.
    weight: (E, C, kh, kw) PyTorch Conv2d OIHW layout.
    bias:   (E,)
    Returns (B, E, Hp, Wp) NCHW (default) or (B, Hp, Wp, E) when
    channels_last=True (skips one full HBM transpose pass), dtype of x.
    """
    if kernel_size is None:
        kernel_size = patch_size
    k, p = kernel_size, patch_size
    pad = (k - p + 1) // 2

    B, C, H, W = x.shape
    E = weight.shape[0]
    out_dtype = x.dtype

    xc = x.astype(compute_dtype)
    if pad > 0:
        # padding_mode='reflect' (edge element excluded), same as PyTorch.
        xc = jnp.pad(xc, ((0, 0), (0, 0), (pad, pad), (pad, pad)),
                     mode="reflect")
    Hpad, Wpad = xc.shape[2], xc.shape[3]
    Hp = (Hpad - k) // p + 1
    Wp = (Wpad - k) // p + 1
    M = B * Hp * Wp
    K = C * k * k

    if k == p:
        # Non-overlapping patches: single reshape/transpose im2col pass.
        # TODO(synk): fuse this im2col into the kernel (feed the 6-D NCHW
        # view via BlockSpec and reorder per-tile in VMEM) to drop one full
        # write+read HBM pass over M*K in the mem-bound regime.
        patches = (xc.reshape(B, C, Hp, p, Wp, p)
                     .transpose(0, 2, 4, 1, 3, 5)
                     .reshape(M, K))
    else:
        # Overlapping patches: build directly in the final (B,Hp,Wp,C,k*k)
        # order from an NHWC view -> one materialization instead of two.
        # TODO(synk): fuse the (di,dj) gathers into the kernel (manual
        # strided DMA) to remove the (k/p)^2 duplicated im2col traffic.
        xl = xc.transpose(0, 2, 3, 1)                      # (B, Hpad, Wpad, C)
        offs = [xl[:, di:di + p * Hp:p, dj:dj + p * Wp:p, :]
                for di in range(k) for dj in range(k)]
        patches = jnp.stack(offs, axis=-1).reshape(M, K)   # (M, C*k*k)

    # ---- K padding / tiling ------------------------------------------------
    if K <= max_k_block:
        # single K block (common case): round up to a lane-dense 128 multiple
        # when the zero-pad overhead is modest, else keep the exact full-dim
        # block (tiny K: doubling patch bytes costs more than masked loads).
        K_128 = _round_up(K, 128)
        K_pad = K_128 if (K % 128 != 0 and (K_128 - K) / K <= 0.25) else K
        tk = K_pad
    else:
        # tiled contraction: 128-aligned tiles (pass a 256-multiple
        # max_k_block on v6e/v7x for full 256-deep MXU passes).
        tk = max(128, _round_up(min(max_k_block, 1024), 128))
        K_pad = _round_up(K, tk)

    # ---- E / M tiling -------------------------------------------------------
    E_pad = _round_up(E, 128)
    te = _choose_te(E_pad)
    e_steps = E_pad // te
    tm = _choose_tm(M, e_steps)
    M_pad = _round_up(M, tm)

    if M_pad != M or K_pad != K:
        patches = jnp.pad(patches, ((0, M_pad - M), (0, K_pad - K)))
    w2d = weight.reshape(E, K).T.astype(compute_dtype)       # (K, E)
    if K_pad != K or E_pad != E:
        w2d = jnp.pad(w2d, ((0, K_pad - K), (0, E_pad - E)))
    b2d = bias.astype(jnp.float32).reshape(1, E)
    if E_pad != E:
        b2d = jnp.pad(b2d, ((0, 0), (0, E_pad - E)))

    out = _projection_matmul(patches, w2d, b2d, out_dtype, tm=tm, tk=tk, te=te)
    out = out[:M, :E].reshape(B, Hp, Wp, E)

    if channels_last:
        return out                       # (B, Hp, Wp, E): no extra HBM pass
    return out.transpose(0, 3, 1, 2)     # NCHW, matches the PyTorch module


# --------------------------------------------------------------------------
# Reference + self-test
# --------------------------------------------------------------------------
def _reference_conv(x, weight, bias, *, patch_size, kernel_size=None):
    if kernel_size is None:
        kernel_size = patch_size
    pad = (kernel_size - patch_size + 1) // 2
    if pad > 0:
        x = jnp.pad(x, ((0, 0), (0, 0), (pad, pad), (pad, pad)),
                    mode="reflect")
    out = jax.lax.conv_general_dilated(
        x, weight,
        window_strides=(patch_size, patch_size),
        padding="VALID",
        dimension_numbers=("NCHW", "OIHW", "NCHW"),
    )
    return out + bias.reshape(1, -1, 1, 1)


if __name__ == "__main__":
    base_key = jax.random.PRNGKey(0)

    def run_case(case_id, B, C, H, W, patch_size, embed_dim, kernel_size,
                 max_k_block):
        k = patch_size if kernel_size is None else kernel_size
        kx, kw, kb = jax.random.split(jax.random.fold_in(base_key, case_id), 3)
        x = jax.random.normal(kx, (B, C, H, W), dtype=jnp.float32)
        weight = jax.random.normal(kw, (embed_dim, C, k, k),
                                   dtype=jnp.float32) * 0.05
        bias = jax.random.normal(kb, (embed_dim,), dtype=jnp.float32) * 0.05

        fwd = jax.jit(functools.partial(
            patch_embed_forward, patch_size=patch_size,
            kernel_size=kernel_size, max_k_block=max_k_block))
        out = jax.block_until_ready(fwd(x, weight, bias))

        ref = _reference_conv(x, weight, bias, patch_size=patch_size,
                              kernel_size=kernel_size)
        assert out.shape == ref.shape, (out.shape, ref.shape)
        # bf16 operands (f32 accumulation) -> loosened tolerance vs f32 ref.
        err = jnp.max(jnp.abs(out - ref))
        assert jnp.allclose(out, ref, atol=3e-2, rtol=3e-2), \
            f"case {case_id} mismatch: max abs err {err}"

    # Case 1: kernel_size == patch_size -> single-K-step fast-path kernel.
    run_case(0, B=2, C=4, H=16, W=16, patch_size=4, embed_dim=32,
             kernel_size=None, max_k_block=2048)
    # Case 2: kernel_size > patch_size (reflect pad) + tiled-K accumulator
    # kernel (small max_k_block forces >= 2 K steps).
    run_case(1, B=2, C=3, H=32, W=32, patch_size=4, embed_dim=96,
             kernel_size=8, max_k_block=128)

    print("KERNEL_OK")
</pallas_src>

<mosaic_0001>
module attributes {stable_mosaic.version = 11 : i64} {
  func.func @_proj_kernel_single(%arg0: i32, %arg1: i32, %arg2: memref<16x64xbf16, #tpu.memory_space<vmem>>, %arg3: memref<64x128xbf16, #tpu.memory_space<vmem>>, %arg4: memref<1x128xf32, #tpu.memory_space<vmem>>, %arg5: memref<16x128xf32, #tpu.memory_space<vmem>>) attributes {dimension_semantics = [#tpu.dimension_semantics<parallel>, #tpu.dimension_semantics<parallel>], iteration_bounds = array<i64: 2, 1>, scalar_prefetch = 0 : i64, scratch_operands = 0 : i64, tpu.core_type = #tpu.core_type<tc>, window_params = [{transform_indices = @transform_0, window_bounds = array<i64: 16, 64>}, {transform_indices = @transform_1, window_bounds = array<i64: 64, 128>}, {transform_indices = @transform_2, window_bounds = array<i64: 1, 128>}, {transform_indices = @transform_3, window_bounds = array<i64: 16, 128>}]} {
    %c0 = arith.constant 0 : index
    %c0_0 = arith.constant 0 : index
    %0 = vector.load %arg2[%c0, %c0_0] : memref<16x64xbf16, #tpu.memory_space<vmem>>, vector<16x64xbf16>
    %c0_1 = arith.constant 0 : index
    %c0_2 = arith.constant 0 : index
    %1 = vector.load %arg3[%c0_1, %c0_2] : memref<64x128xbf16, #tpu.memory_space<vmem>>, vector<64x128xbf16>
    %cst = arith.constant dense<0.000000e+00> : vector<16x128xf32>
    %2 = tpu.matmul %0, %1, %cst {dimension_numbers = #tpu.dot_dimension_numbers<[1], [0], [0], [1], [0, 0, 1, 1], [], []>} : vector<16x64xbf16>, vector<64x128xbf16>, vector<16x128xf32> -> vector<16x128xf32>
    %c0_3 = arith.constant 0 : index
    %c0_4 = arith.constant 0 : index
    %3 = vector.load %arg4[%c0_3, %c0_4] : memref<1x128xf32, #tpu.memory_space<vmem>>, vector<1x128xf32>
    %4 = vector.broadcast %3 : vector<1x128xf32> to vector<16x128xf32>
    %5 = arith.addf %2, %4 : vector<16x128xf32>
    %c0_5 = arith.constant 0 : index
    %c0_6 = arith.constant 0 : index
    %6 = vector.load %arg5[%c0_5, %c0_6] : memref<16x128xf32, #tpu.memory_space<vmem>>, vector<16x128xf32>
    tpu.vector_store %arg5[%c0_5, %c0_6], %5 {strides = array<i32>} : memref<16x128xf32, #tpu.memory_space<vmem>>, vector<16x128xf32>,
    return
  }
  func.func @transform_0(%arg0: i32, %arg1: i32) -> (i32, i32) {
    %c0_i32 = arith.constant 0 : i32
    %c0_i32_0 = arith.constant 0 : i32
    return %arg0, %c0_i32 : i32, i32
  }
  func.func @transform_1(%arg0: i32, %arg1: i32) -> (i32, i32) {
    %c0_i32 = arith.constant 0 : i32
    %c0_i32_0 = arith.constant 0 : i32
    return %c0_i32, %arg1 : i32, i32
  }
  func.func @transform_2(%arg0: i32, %arg1: i32) -> (i32, i32) {
    %c0_i32 = arith.constant 0 : i32
    %c0_i32_0 = arith.constant 0 : i32
    return %c0_i32, %arg1 : i32, i32
  }
  func.func @transform_3(%arg0: i32, %arg1: i32) -> (i32, i32) {
    %c0_i32 = arith.constant 0 : i32
    return %arg0, %arg1 : i32, i32
  }
}

</mosaic_0001>

<llo_original>
// kernel: patch_embed_forward.1
$region0: #{patch_embed_forward.1}
  #allocation0 [shape = 'u32[]', space=smem, size = 0x4, offset = 0x4, fixed_abs, tag = 'smem constant byte address 0x4 - core index']
  #allocation1 [shape = 'u32[72,128]{1,0:T(1,128)}', space=vmem, size = 0x9000, scoped, tag = 'internal scratch']
  %s0 = inlined_call_operand.vmem [shape: bf16[32,64], index: 0, kind: input, shape index: {}]
  %s1 = inlined_call_operand.vmem [shape: bf16[64,128], index: 1, kind: input, shape index: {}]
  %s2 = inlined_call_operand.vmem [shape: f32[1,128], index: 2, kind: input, shape index: {}]
  %s3 = inlined_call_operand.hbm [shape: f32[32,128], index: 3, kind: output, shape index: {}]
  %s4 = sld [smem:[#allocation0]]
  $region45: #{patch_embed_forward.1} parent=0
    _
  %s6 = ssub.s32 1, %s4
  %s7 = scalar_select 0, %s6, %s4
  $region1: #{patch_embed_forward.1} parent=0
    #allocation2 [shape = 'u8[16384]{0}', space=vmem, size = 0x4000, scoped, tag = 'output window, operand 0']
    #allocation3 [shape = 's32[2]{0}', space=sflag, size = 0x8, scoped, tag = 'scoped memory for patch_embed_forward.1']
    %8 = vsyncpa [#allocation3], 0
    %s9 = scalar_lea.sflag [#allocation3], 1
    %10 = vsyncpa %s9, 0
    loop: start=0, step=1, limit=4
    $region2: #{patch_embed_forward.1} parent=1 // loop_pre_header
      _
    $region3: #{patch_embed_forward.1} parent=1 // loop_header
      %s12 = sphi 0, %s16
      %p13 = scmp.ge.s32.totalorder %s12, 4
      %s19 = sphi 0, %s31
      %s20 = sphi 0, %s27
      %s21 = sphi 0, %s19
      %s22 = sphi 0, %s20
      %s23 = sphi 0, %s21
      %s24 = sphi 0, %s22
      %s34 = sphi 0, %s36
      %s37 = sphi 0, %s34
      %s38 = sphi 0, %s37
      %s54 = sphi 0, %s38
      %s60 = sphi 0, %s62
      %s63 = sphi 0, %s60
      %s64 = sphi 0, %s63
      %s80 = sphi 0, %s64
      %s86 = sphi 0, %s88
      %s89 = sphi 0, %s86
      %s90 = sphi 0, %s89
      %s106 = sphi 0, %s90
      %s114 = sphi 0, %s116
      %s117 = sphi 0, %s114
      %s118 = sphi 0, %s117
      %s134 = sphi 0, %s118
    $region4: #{patch_embed_forward.1} parent=1 // loop_header_branch
      %15 = sbr.rel (%p13) target = $region8
    $region5: #{patch_embed_forward.1} parent=1 // loop_body
      %s17 = ssub.s32 %s12, 1
      %s18 = ssub.s32 %s12, 2
      %s25 = sadd.s32 1, %s20
      %p26 = scmp.ge.s32.totalorder %s25, 1
      %s27 = scalar_select %p26, 0, %s25
      %s28 = sadd.s32 1, %s19
      %s29 = scalar_select %p26, %s28, %s19
      %p30 = scmp.ge.s32.totalorder %s29, 2
      %s31 = scalar_select %p30, 0, %s29
      %s32 = ssub.s32 %s19, %s31
      %p33 = scmp.eq.s32.totalorder %s32, 0
      %s35 = sadd.s32 %s34, 1
      %s36 = scalar_select %p33, %s34, %s35
      %p39 = pneg %p33
      %p40 = scmp.eq.s32.totalorder %s12, 1
      %p41 = por %p39, %p40
      %p42 = scmp.ne.s32.totalorder %s34, %s37
      %p43 = scmp.eq.s32.totalorder %s12, 0
      %p44 = por %p42, %p43
      %p45 = scmp.ne.s32.totalorder %s34, %s37
      %p46 = scmp.eq.s32.totalorder %s17, 1
      %p47 = por %p45, %p46
      %p48 = scmp.ne.s32.totalorder %s37, %s38
      %p49 = scmp.eq.s32.totalorder %s17, 0
      %p50 = por %p48, %p49
      %p51 = scmp.ne.s32.totalorder %s37, %s38
      %p52 = scmp.eq.s32.totalorder %s18, 1
      %p53 = por %p51, %p52
      %p55 = scmp.ne.s32.totalorder %s38, %s54
      %p56 = scmp.eq.s32.totalorder %s18, 0
      %p57 = por %p55, %p56
      %s58 = ssub.s32 %s20, %s27
      %p59 = scmp.eq.s32.totalorder %s58, 0
      %s61 = sadd.s32 %s60, 1
      %s62 = scalar_select %p59, %s60, %s61
      %p65 = pneg %p59
      %p66 = scmp.eq.s32.totalorder %s12, 1
      %p67 = por %p65, %p66
      %p68 = scmp.ne.s32.totalorder %s60, %s63
      %p69 = scmp.eq.s32.totalorder %s12, 0
      %p70 = por %p68, %p69
      %p71 = scmp.ne.s32.totalorder %s60, %s63
      %p72 = scmp.eq.s32.totalorder %s17, 1
      %p73 = por %p71, %p72
      %p74 = scmp.ne.s32.totalorder %s63, %s64
      %p75 = scmp.eq.s32.totalorder %s17, 0
      %p76 = por %p74, %p75
      %p77 = scmp.ne.s32.totalorder %s63, %s64
      %p78 = scmp.eq.s32.totalorder %s18, 1
      %p79 = por %p77, %p78
      %p81 = scmp.ne.s32.totalorder %s64, %s80
      %p82 = scmp.eq.s32.totalorder %s18, 0
      %p83 = por %p81, %p82
      %s84 = ssub.s32 %s20, %s27
      %p85 = scmp.eq.s32.totalorder %s84, 0
      %s87 = sadd.s32 %s86, 1
      %s88 = scalar_select %p85, %s86, %s87
      %p91 = pneg %p85
      %p92 = scmp.eq.s32.totalorder %s12, 1
      %p93 = por %p91, %p92
      %p94 = scmp.ne.s32.totalorder %s86, %s89
      %p95 = scmp.eq.s32.totalorder %s12, 0
      %p96 = por %p94, %p95
      %p97 = scmp.ne.s32.totalorder %s86, %s89
      %p98 = scmp.eq.s32.totalorder %s17, 1
      %p99 = por %p97, %p98
      %p100 = scmp.ne.s32.totalorder %s89, %s90
      %p101 = scmp.eq.s32.totalorder %s17, 0
      %p102 = por %p100, %p101
      %p103 = scmp.ne.s32.totalorder %s89, %s90
      %p104 = scmp.eq.s32.totalorder %s18, 1
      %p105 = por %p103, %p104
      %p107 = scmp.ne.s32.totalorder %s90, %s106
      %p108 = scmp.eq.s32.totalorder %s18, 0
      %p109 = por %p107, %p108
      %s110 = ssub.s32 %s19, %s31
      %s111 = ssub.s32 %s20, %s27
      %s112 = sor.u32 %s110, %s111
      %p113 = scmp.eq.s32.totalorder %s112, 0
      %s115 = sadd.s32 %s114, 1
      %s116 = scalar_select %p113, %s114, %s115
      %p119 = pneg %p113
      %p120 = scmp.eq.s32.totalorder %s12, 1
      %p121 = por %p119, %p120
      %p122 = scmp.ne.s32.totalorder %s114, %s117
      %p123 = scmp.eq.s32.totalorder %s12, 0
      %p124 = por %p122, %p123
      %p125 = scmp.ne.s32.totalorder %s114, %s117
      %p126 = scmp.eq.s32.totalorder %s17, 1
      %p127 = por %p125, %p126
      %p128 = scmp.ne.s32.totalorder %s117, %s118
      %p129 = scmp.eq.s32.totalorder %s17, 0
      %p130 = por %p128, %p129
      %p131 = scmp.ne.s32.totalorder %s117, %s118
      %p132 = scmp.eq.s32.totalorder %s18, 1
      %p133 = por %p131, %p132
      %p135 = scmp.ne.s32.totalorder %s118, %s134
      %p136 = scmp.eq.s32.totalorder %s18, 0
      %p137 = por %p135, %p136
      %p138 = scmp.le.s32.totalorder 1, %s12
      %p139 = scmp.lt.s32.totalorder %s12, 3
      %p140 = pnand %p138, %p139
      %p141 = pneg %p140
      // Predicated region
      $region9: #{patch_embed_forward.1} parent=5 // pred_check
        _
      $region10: #{patch_embed_forward.1} parent=5 // pred_check_branch
        %143 = sbr.rel (%p140) target = $region12
      $region11: #{patch_embed_forward.1} parent=5 // pred_region
        %s144 = ssub.s32 %s12, 1
        // Predicated region
        $region13: #{patch_embed_forward.1} parent=11 // pred_check
          %p145 = pneg %p76
        $region14: #{patch_embed_forward.1} parent=11 // pred_check_branch
          %147 = sbr.rel (%p145) target = $region16
        $region15: #{patch_embed_forward.1} parent=11 // pred_region
          %p148 = scmp.lt.s32.totalorder %s22, 0
          %s149 = scalar_select %p148, %s22, 0
          %s150 = smul.addr %s149, 4
          %s151 = scalar_lea.vmem %s1, %s150
        $region16: #{patch_embed_forward.1} parent=11 // pred_fallthru
          _
        // Predicated region
        $region17: #{patch_embed_forward.1} parent=11 // pred_check
          %p152 = pneg %p102
        $region18: #{patch_embed_forward.1} parent=11 // pred_check_branch
          %154 = sbr.rel (%p152) target = $region20
        $region19: #{patch_embed_forward.1} parent=11 // pred_region
          %p155 = scmp.lt.s32.totalorder %s22, 0
          %s156 = scalar_select %p155, %s22, 0
          %s157 = scalar_lea.vmem %s2, %s156
        $region20: #{patch_embed_forward.1} parent=11 // pred_fallthru
          _
      $region12: #{patch_embed_forward.1} parent=5 // pred_fallthru
        _
      %p158 = scmp.lt.s32.totalorder %s12, 2
      // Predicated region
      $region21: #{patch_embed_forward.1} parent=5 // pred_check
        %p159 = pneg %p158
      $region22: #{patch_embed_forward.1} parent=5 // pred_check_branch
        %161 = sbr.rel (%p159) target = $region24
      $region23: #{patch_embed_forward.1} parent=5 // pred_region
        // Predicated region
        $region25: #{patch_embed_forward.1} parent=23 // pred_check
          %p162 = pneg %p44
        $region26: #{patch_embed_forward.1} parent=23 // pred_check_branch
          %164 = sbr.rel (%p162) target = $region28
        $region27: #{patch_embed_forward.1} parent=23 // pred_region
          %s165 = smul.u32 2, %s19
          %p166 = scmp.lt.s32.totalorder %s165, 3
          %s167 = scalar_select %p166, %s165, 3
          %s168 = smul.addr %s167, 4
          %s169 = scalar_lea.vmem %s0, %s168
          %s170 = smul.u32 2, %s19
        $region28: #{patch_embed_forward.1} parent=23 // pred_fallthru
          _
      $region24: #{patch_embed_forward.1} parent=5 // pred_fallthru
        _
      %p171 = scmp.le.s32.totalorder 1, %s12
      %p172 = scmp.lt.s32.totalorder %s12, 3
      %p173 = pnand %p171, %p172
      %p174 = pneg %p173
      // Predicated region
      $region29: #{patch_embed_forward.1} parent=5 // pred_check
        _
      $region30: #{patch_embed_forward.1} parent=5 // pred_check_branch
        %176 = sbr.rel (%p173) target = $region32
      $region31: #{patch_embed_forward.1} parent=5 // pred_region
        %s177 = ssub.s32 %s12, 1
        %s178 = smul.u32 2, %s21
        %p179 = scmp.lt.s32.totalorder %s178, 3
        %s180 = scalar_select %p179, %s178, 3
        %s181 = smul.addr %s180, 4
        %s182 = scalar_lea.vmem %s0, %s181
        %p183 = pneg %p50
        %p184 = pneg %p47
        %p185 = scmp.lt.s32.totalorder %s22, 0
        %s186 = scalar_select %p185, %s22, 0
        %s187 = smul.addr %s186, 4
        %s188 = scalar_lea.vmem %s1, %s187
        %p189 = pneg %p76
        %p190 = pneg %p73
        %p191 = scmp.lt.s32.totalorder %s22, 0
        %s192 = scalar_select %p191, %s22, 0
        %s193 = scalar_lea.vmem %s2, %s192
        %p194 = pneg %p102
        %p195 = pneg %p99
        %p196 = pneg %p130
        %p197 = pneg %p127
        %s198 = sand.u32 %s117, 1
        %s199 = scalar_lea.sflag [#allocation3], %s198
        %s200 = sand.u32 %s117, 1
        %s201 = smul.addr %s200, 16
        %s202 = scalar_lea.vmem [#allocation2], %s201
        %s203 = smul.u32 2, %s21
        %p204 = scmp.lt.s32.totalorder %s203, 3
        %s205 = scalar_select %p204, %s203, 3
        %s206 = smul.addr %s205, 4
        %s207 = scalar_lea.vmem %s0, %s206
        %s208 = smul.u32 2, %s21
        %p209 = scmp.lt.s32.totalorder %s22, 0
        %s210 = scalar_select %p209, %s22, 0
        %s211 = smul.addr %s210, 4
        %s212 = scalar_lea.vmem %s1, %s211
        %p213 = scmp.lt.s32.totalorder %s22, 0
        %s214 = scalar_select %p213, %s22, 0
        %s215 = scalar_lea.vmem %s2, %s214
        %s216 = smul.u32 2, %s21
        %v218 = vld [vmem:[%s207] sm:$0xf]
        %v219 = vld [vmem:[%s207 + $0x4] sm:$0xf]
        %v220 = vld [vmem:[%s212] sm:$0xf]
        %v221 = vld [vmem:[%s212 + $0x4] sm:$0xf]
        %v222 = vld [vmem:[%s212 + $0x8] sm:$0xf]
        %v223 = vld [vmem:[%s212 + $0xc] sm:$0xf]
        %v224 = vld [vmem:[%s212 + $0x10] sm:$0xf]
        %v225 = vld [vmem:[%s212 + $0x14] sm:$0xf]
        %v226 = vld [vmem:[%s212 + $0x18] sm:$0xf]
        %v227 = vld [vmem:[%s212 + $0x1c] sm:$0xf]
        %v228 = vld [vmem:[%s215] sm:$0x1]
        %v230 = vperm.slane %v228, 0
        %v234 = vunpack.c.l.b16 %v218
        %v235 = vunpack.c.l.b16 %v219
        %v236 = vpack.c.b16 %v235, %v234
        %v245 = vunpack.c.l.b16 %v220
        %v246 = vunpack.c.l.b16 %v221
        %v247 = vunpack.c.l.b16 %v222
        %v248 = vunpack.c.l.b16 %v223
        %v249 = vunpack.c.l.b16 %v224
        %v250 = vunpack.c.l.b16 %v225
        %v251 = vunpack.c.l.b16 %v226
        %v252 = vunpack.c.l.b16 %v227
        %v253 = vpack.c.b16 %v246, %v245
        %v254 = vpack.c.b16 %v248, %v247
        %v255 = vpack.c.b16 %v250, %v249
        %v256 = vpack.c.b16 %v252, %v251
        %vm261 = vcmask 523264
        %v263 = vsel %vm261, %v236, 0
        %265 = vmatpush.bf16.msra.mxu0 0
        %266 = vmatpush.bf16.msra.mxu0 0
        %267 = vmatpush.bf16.msra.mxu0 0
        %268 = vmatpush.bf16.msra.mxu0 0
        %269 = vmatpush.bf16.msra.mxu0 %v256
        %270 = vmatpush.bf16.msra.mxu0 %v255
        %271 = vmatpush.bf16.msra.mxu0 %v254
        %272 = vmatpush.bf16.msra.mxu0 %v253
        %273 = vmatmul.bf16.gmra.mxu0 %v263
        %v274 = vpop.f32.mrf.mxu0
        %v275 = vadd.f32 %v230, %v274
        %v276 = vpop.f32.mrf.mxu0
        %v277 = vadd.f32 %v230, %v276
        %278 = vdwg.mxu0
        %279 = vst [vmem:[%s202] sm:$0xff] %v275
        %280 = vst [vmem:[%s202 + $0x8] sm:$0xff] %v277
        %s281 = sand.u32 %s117, 1
        %s282 = scalar_lea.sflag [#allocation3], %s281
        %s283 = sand.u32 %s117, 1
        %s284 = smul.addr %s283, 16
        %s285 = scalar_lea.vmem [#allocation2], %s284
        // Predicated region
        $region33: #{patch_embed_forward.1} parent=31 // pred_check
          %p286 = pneg %p127
        $region34: #{patch_embed_forward.1} parent=31 // pred_check_branch
          %288 = sbr.rel (%p286) target = $region36
        $region35: #{patch_embed_forward.1} parent=31 // pred_region
          %s289 = smul.u32 2, %s21
          %291 = vsyncadd %s282, 0
          %s292 = sadd.s32 %s22, %s289
          %s293 = smul.addr %s292, 8
          %s294 = scalar_lea.hbm %s3, %s293
          %s295 = sshll.u32 %s285, 4
          %s296 = int_to_ptr.vmem [resolvable:$true] %s295
          %s297 = sshll.u32 %s294, 4
          %s298 = int_to_ptr.hbm [resolvable:$true] %s297
          %303 = dma.vmem_to_hbm [thread:$0]  %s296, 256, %s298, %s282, 128, 128, 8
        $region36: #{patch_embed_forward.1} parent=31 // pred_fallthru
          _
      $region32: #{patch_embed_forward.1} parent=5 // pred_fallthru
        _
      %p304 = scmp.le.s32.totalorder 2, %s12
      // Predicated region
      $region37: #{patch_embed_forward.1} parent=5 // pred_check
        %p305 = pneg %p304
      $region38: #{patch_embed_forward.1} parent=5 // pred_check_branch
        %307 = sbr.rel (%p305) target = $region40
      $region39: #{patch_embed_forward.1} parent=5 // pred_region
        %s308 = ssub.s32 %s12, 2
        // Predicated region
        $region41: #{patch_embed_forward.1} parent=39 // pred_check
          %p309 = pneg %p133
        $region42: #{patch_embed_forward.1} parent=39 // pred_check_branch
          %311 = sbr.rel (%p309) target = $region44
        $region43: #{patch_embed_forward.1} parent=39 // pred_region
          %s312 = sand.u32 %s118, 1
          %s313 = scalar_lea.sflag [#allocation3], %s312
          %s314 = sand.u32 %s118, 1
          %s315 = smul.addr %s314, 16
          %s316 = scalar_lea.vmem [#allocation2], %s315
          %318 = dma.done %s313, 256
        $region44: #{patch_embed_forward.1} parent=39 // pred_fallthru
          _
      $region40: #{patch_embed_forward.1} parent=5 // pred_fallthru
        _
    $region6: #{patch_embed_forward.1} parent=1 // loop_footer
      %s16 = sadd.s32 1, %s12
    $region7: #{patch_embed_forward.1} parent=1 // loop_footer_branch
      %11 = sbr.rel target = $region3
    $region8: #{patch_embed_forward.1} parent=1 // loop_exit
      _
    %319 = vsyncpa [#allocation3], 1
    %s320 = scalar_lea.sflag [#allocation3], 1
    %321 = vsyncpa %s320, 1

</llo_original>
